<compile_context>
chip_gen: v7x
topology: tpu7x:2x2x1
jax: 0.10.0
libtpu: 0.0.40
codegen_flags: <defaults>
</compile_context>

<pallas_src>
import numpy as np

import jax
import jax.numpy as jnp
from jax.experimental import pallas as pl
from jax.experimental.pallas import tpu as pltpu

# ---------------- model hyper-parameters (constructor args) ----------------
VOCAB_SIZE = 32
EMBED_DIM = 32          # embedding_dim
OUTPUT_SIZE = 8         # output_size
FILTER_NUM = 16         # filter_num
KERNEL_LIST = (1, 2, 3) # kernel_list
SEQ_LEN = 16            # sequence length S
BATCH = 2


def _round_up(x, m):
    return (x + m - 1) // m * m


def slab_layout(batch, seq_len, embed, filter_num, kernel_list):
    """Row layout of the single packed bf16 parameter slab (rows, 3F)."""
    kmax = max(kernel_list)
    nf = filter_num * len(kernel_list)
    bs = batch * seq_len
    w0, w1 = 0, kmax * embed                 # im2col conv weights (96, 3F)
    m0, m1 = w1, w1 + bs                     # additive tail mask   (BS, 3F)
    f0, f1 = m1, m1 + nf                     # lane-padded fc weight (3F, 3F)
    bconv = _round_up(f1, 8)                 # conv bias row        (1, 3F)
    bfc = bconv + 8                          # fc bias row (padded) (1, 3F)
    rows = bfc + 8
    return dict(w=(w0, w1), mask=(m0, m1), fcw=(f0, f1),
                bconv=bconv, bfc=bfc, rows=rows,
                kmax=kmax, nf=nf, bs=bs)


def make_textcnn_kernel(batch, seq_len, vocab, embed, filter_num, kernel_list,
                        out_dim):
    """Builds the fully fused kernel body (shapes baked in as Python ints)."""
    lay = slab_layout(batch, seq_len, embed, filter_num, kernel_list)
    kmax, bs = lay["kmax"], lay["bs"]

    def kernel(x_ref,                   # (B*S, 1) int32 token ids
               tab_ref,                 # (V, E) bf16 embedding table
               slab_ref,                # (rows, 3F) bf16 packed parameters
               out_ref):                # (B, O) f32
        # ---- fused embedding gather: one_hot(x) @ table on the MXU ----
        ids = x_ref[...]                                             # (BS, 1)
        vocab_ids = jax.lax.broadcasted_iota(jnp.int32, (bs, vocab), 1)
        onehot = (ids == vocab_ids).astype(jnp.bfloat16)             # (BS, V)
        emb = jnp.dot(onehot, tab_ref[...],
                      preferred_element_type=jnp.float32)            # (BS, E), exact

        # ---- im2col via XLU sublane rolls (no O((B*S)^2) shift matrices) ----
        # pltpu.roll(emb, BS - j, axis=0)[i] == emb[(i + j) % BS].
        # Wrapped / cross-sequence rows are harmless ONLY because:
        #   (a) taps j >= k have zero weight columns in the fused slab, and
        #   (b) tail positions pos > S - k are masked to -1e30 before the max.
        shifted = [emb] + [pltpu.roll(emb, shift=bs - j, axis=0)
                           for j in range(1, kmax)]
        emb_cat = jnp.concatenate(shifted, axis=1).astype(jnp.bfloat16)  # (BS, kmax*E)

        # ---- all three convolutions as ONE MXU matmul against (96, 3F) ----
        w_flat = slab_ref[lay["w"][0]:lay["w"][1], :]                # (96, 3F) bf16
        conv = jnp.dot(emb_cat, w_flat,
                       preferred_element_type=jnp.float32)           # (BS, 3F) f32
        conv = conv + slab_ref[lay["bconv"]:lay["bconv"] + 1, :].astype(jnp.float32)

        # hardswish: x * relu6(x + 3) / 6
        act = conv * jnp.clip(conv + 3.0, 0.0, 6.0) * (1.0 / 6.0)

        # static tail-validity mask (0 / -1e30), precomputed host-side
        act = act + slab_ref[lay["mask"][0]:lay["mask"][1], :].astype(jnp.float32)

        # max-over-time per batch element (seq_len-row slices, sublane aligned)
        pooled = jnp.concatenate(
            [jnp.max(act[b * seq_len:(b + 1) * seq_len, :], axis=0,
                     keepdims=True)
             for b in range(batch)], axis=0)                         # (B, 3F)

        # dropout == identity in eval mode; fc weight lane-padded to (3F, 3F)
        fc_w = slab_ref[lay["fcw"][0]:lay["fcw"][1], :]              # (3F, 3F) bf16
        logit = jnp.dot(pooled.astype(jnp.bfloat16), fc_w,
                        preferred_element_type=jnp.float32)          # (B, 3F)
        logit = logit + slab_ref[lay["bfc"]:lay["bfc"] + 1, :].astype(jnp.float32)
        out_ref[...] = logit[:, :out_dim].astype(out_ref.dtype)      # (B, O)

    return kernel


def textcnn_forward(x_ids, fused):
    """x_ids: (B, S) int32 token ids. fused: kernel-ready params. -> (B, O)."""
    B, S = x_ids.shape
    kernel = make_textcnn_kernel(B, S, VOCAB_SIZE, EMBED_DIM, FILTER_NUM,
                                 KERNEL_LIST, OUTPUT_SIZE)
    x_col = x_ids.reshape(B * S, 1).astype(jnp.int32)

    vmem = lambda: pl.BlockSpec(memory_space=pltpu.MemorySpace.VMEM)
    return pl.pallas_call(
        kernel,
        out_shape=jax.ShapeDtypeStruct((B, OUTPUT_SIZE), jnp.float32),
        in_specs=[vmem(), vmem(), vmem()],
        out_specs=vmem(),
    )(x_col, fused["table"], fused["slab"])


def init_params(key):
    """Deterministic synthetic parameters matching the nn.Module shapes."""
    keys = jax.random.split(key, 10)
    p = {}
    # embedding table (V, E)
    p["embedding"] = jax.random.normal(keys[0], (VOCAB_SIZE, EMBED_DIM),
                                       jnp.float32) * 0.1
    # conv weights: torch Conv2d weight is (F, 1, k, E); stored here as (k, E, F)
    for i, k in enumerate(KERNEL_LIST):
        p[f"w{i + 1}"] = jax.random.normal(keys[1 + 2 * i],
                                           (k, EMBED_DIM, FILTER_NUM),
                                           jnp.float32) * 0.1
        p[f"b{i + 1}"] = jax.random.normal(keys[2 + 2 * i], (1, FILTER_NUM),
                                           jnp.float32) * 0.1
    # fc: torch Linear weight (O, 3F); stored as transpose (3F, O)
    p["fc_w"] = jax.random.normal(keys[7],
                                  (FILTER_NUM * len(KERNEL_LIST), OUTPUT_SIZE),
                                  jnp.float32) * 0.1
    p["fc_b"] = jax.random.normal(keys[8], (1, OUTPUT_SIZE), jnp.float32) * 0.1
    return p


def fuse_params(params, batch=BATCH, seq_len=SEQ_LEN):
    """One-time host-side fusion into: bf16 table + one packed bf16 slab."""
    E, F, O = EMBED_DIM, FILTER_NUM, OUTPUT_SIZE
    lay = slab_layout(batch, seq_len, E, F, KERNEL_LIST)
    kmax, nf, bs = lay["kmax"], lay["nf"], lay["bs"]

    # im2col weight (kmax*E, 3F): rows [j*E:(j+1)*E] = tap j; taps j >= k are 0.
    taps = []
    for j in range(kmax):
        cols = []
        for g, k in enumerate(KERNEL_LIST):
            cols.append(np.asarray(params[f"w{g + 1}"][j]) if j < k
                        else np.zeros((E, F), np.float32))
        taps.append(np.concatenate(cols, axis=1))                 # (E, 3F)
    w_flat = np.concatenate(taps, axis=0)                         # (kmax*E, 3F)

    # additive tail mask: -1e30 where pos-in-seq > S - k for that filter group
    pos = np.arange(bs) % seq_len
    mask = np.zeros((bs, nf), np.float32)
    for g, k in enumerate(KERNEL_LIST):
        mask[pos > seq_len - k, g * F:(g + 1) * F] = -1e30

    # fc weight lane-padded to (3F, 3F) so it shares the slab's lane width
    fcw_pad = np.zeros((nf, nf), np.float32)
    fcw_pad[:, :O] = np.asarray(params["fc_w"])
    fcb_pad = np.zeros((nf,), np.float32)
    fcb_pad[:O] = np.asarray(params["fc_b"][0])
    b_all = np.concatenate([np.asarray(params[f"b{g + 1}"][0])
                            for g in range(len(KERNEL_LIST))])    # (3F,)

    slab = np.zeros((lay["rows"], nf), np.float32)
    slab[lay["w"][0]:lay["w"][1]] = w_flat
    slab[lay["mask"][0]:lay["mask"][1]] = mask
    slab[lay["fcw"][0]:lay["fcw"][1]] = fcw_pad
    slab[lay["bconv"]] = b_all
    slab[lay["bfc"]] = fcb_pad

    return {
        "table": jnp.asarray(params["embedding"], jnp.bfloat16),  # (V, E)
        "slab": jnp.asarray(slab, jnp.bfloat16),                  # (rows, 3F)
    }


def reference_forward(x, params):
    """Pure-JAX f32 reference of the PyTorch forward (eval mode)."""
    emb = params["embedding"][x]                              # (B, S, E)
    pooled = []
    for g, k in enumerate(KERNEL_LIST):
        W = params[f"w{g + 1}"]                               # (k, E, F)
        b = params[f"b{g + 1}"]                               # (1, F)
        lout = emb.shape[1] - k + 1
        conv = jnp.zeros((emb.shape[0], lout, FILTER_NUM), jnp.float32)
        for j in range(k):
            conv = conv + jnp.einsum("bse,ef->bsf", emb[:, j:j + lout, :], W[j],
                                     precision=jax.lax.Precision.HIGHEST)
        conv = conv + b[None]                                 # (1, 1, F)
        act = conv * jnp.clip(conv + 3.0, 0.0, 6.0) / 6.0     # hardswish
        pooled.append(jnp.max(act, axis=1))                   # (B, F)
    pooled = jnp.concatenate(pooled, axis=1)                  # (B, 3F)
    return jnp.dot(pooled, params["fc_w"],
                   precision=jax.lax.Precision.HIGHEST) + params["fc_b"]


if __name__ == "__main__":
    key = jax.random.PRNGKey(0)
    pkey, xkey = jax.random.split(key)
    params = init_params(pkey)
    fused = fuse_params(params)

    # token ids (B, S)
    x = jax.random.randint(xkey, (BATCH, SEQ_LEN), 0, VOCAB_SIZE, jnp.int32)

    logits = textcnn_forward(x, fused)
    jax.block_until_ready(logits)
    assert logits.shape == (BATCH, OUTPUT_SIZE)

    # sanity-check against the pure-JAX f32 reference of the PyTorch module;
    # tolerance 2e-2 absorbs bf16 MXU-operand rounding (values are O(0.1-0.5)).
    ref = reference_forward(x, params)
    err = float(jnp.max(jnp.abs(logits - ref)))
    assert err < 2e-2, f"max abs err {err}"

    print("KERNEL_OK")
</pallas_src>

<mosaic_0001>
module attributes {stable_mosaic.version = 11 : i64} {
  func.func @kernel(%arg0: memref<32x1xi32, #tpu.memory_space<vmem>>, %arg1: memref<32x32xbf16, #tpu.memory_space<vmem>>, %arg2: memref<192x48xbf16, #tpu.memory_space<vmem>>, %arg3: memref<2x8xf32, #tpu.memory_space<vmem>>) attributes {dimension_semantics = [], scalar_prefetch = 0 : i64, scratch_operands = 0 : i64, tpu.core_type = #tpu.core_type<tc>} {
    %c0 = arith.constant 0 : index
    %c0_0 = arith.constant 0 : index
    %0 = vector.load %arg0[%c0, %c0_0] : memref<32x1xi32, #tpu.memory_space<vmem>>, vector<32x1xi32>
    %1 = tpu.iota {dimensions = array<i32: 1>} : vector<32x32xi32>
    %2 = vector.broadcast %0 : vector<32x1xi32> to vector<32x32xi32>
    %3 = arith.cmpi eq, %2, %1 : vector<32x32xi32>
    %4 = arith.extui %3 : vector<32x32xi1> to vector<32x32xi32>
    %5 = arith.sitofp %4 : vector<32x32xi32> to vector<32x32xf32>
    %6 = arith.truncf %5 : vector<32x32xf32> to vector<32x32xbf16>
    %c0_1 = arith.constant 0 : index
    %c0_2 = arith.constant 0 : index
    %7 = vector.load %arg1[%c0_1, %c0_2] : memref<32x32xbf16, #tpu.memory_space<vmem>>, vector<32x32xbf16>
    %cst = arith.constant dense<0.000000e+00> : vector<32x32xf32>
    %8 = tpu.matmul %6, %7, %cst {dimension_numbers = #tpu.dot_dimension_numbers<[1], [0], [0], [1], [0, 0, 1, 1], [], []>} : vector<32x32xbf16>, vector<32x32xbf16>, vector<32x32xf32> -> vector<32x32xf32>
    %c31_i32 = arith.constant 31 : i32
    %9 = tpu.dynamic_rotate %8 by %c31_i32 dim 0 : vector<32x32xf32>, i32 -> vector<32x32xf32>
    %c30_i32 = arith.constant 30 : i32
    %10 = tpu.dynamic_rotate %8 by %c30_i32 dim 0 : vector<32x32xf32>, i32 -> vector<32x32xf32>
    %11 = tpu.concatenate %8, %9, %10 in 1 : vector<32x32xf32>, vector<32x32xf32>, vector<32x32xf32> -> vector<32x96xf32>
    %12 = arith.truncf %11 : vector<32x96xf32> to vector<32x96xbf16>
    %c0_3 = arith.constant 0 : index
    %c0_4 = arith.constant 0 : index
    %13 = vector.load %arg2[%c0_3, %c0_4] : memref<192x48xbf16, #tpu.memory_space<vmem>>, vector<96x48xbf16>
    %cst_5 = arith.constant dense<0.000000e+00> : vector<32x48xf32>
    %14 = tpu.matmul %12, %13, %cst_5 {dimension_numbers = #tpu.dot_dimension_numbers<[1], [0], [0], [1], [0, 0, 1, 1], [], []>} : vector<32x96xbf16>, vector<96x48xbf16>, vector<32x48xf32> -> vector<32x48xf32>
    %c176 = arith.constant 176 : index
    %c0_6 = arith.constant 0 : index
    %15 = vector.load %arg2[%c176, %c0_6] : memref<192x48xbf16, #tpu.memory_space<vmem>>, vector<1x48xbf16>
    %16 = arith.extf %15 : vector<1x48xbf16> to vector<1x48xf32>
    %17 = vector.broadcast %16 : vector<1x48xf32> to vector<32x48xf32>
    %18 = arith.addf %14, %17 : vector<32x48xf32>
    %cst_7 = arith.constant 3.000000e+00 : f32
    %19 = vector.broadcast %cst_7 : f32 to vector<32x48xf32>
    %20 = arith.addf %18, %19 : vector<32x48xf32>
    %cst_8 = arith.constant 0.000000e+00 : f32
    %cst_9 = arith.constant 6.000000e+00 : f32
    %21 = vector.broadcast %cst_8 : f32 to vector<32x48xf32>
    %22 = arith.maximumf %21, %20 : vector<32x48xf32>
    %23 = vector.broadcast %cst_9 : f32 to vector<32x48xf32>
    %24 = arith.minimumf %23, %22 : vector<32x48xf32>
    %25 = arith.mulf %18, %24 : vector<32x48xf32>
    %cst_10 = arith.constant 0.166666672 : f32
    %26 = vector.broadcast %cst_10 : f32 to vector<32x48xf32>
    %27 = arith.mulf %25, %26 : vector<32x48xf32>
    %c96 = arith.constant 96 : index
    %c0_11 = arith.constant 0 : index
    %28 = vector.load %arg2[%c96, %c0_11] : memref<192x48xbf16, #tpu.memory_space<vmem>>, vector<32x48xbf16>
    %29 = arith.extf %28 : vector<32x48xbf16> to vector<32x48xf32>
    %30 = arith.addf %27, %29 : vector<32x48xf32>
    %31 = vector.extract_strided_slice %30 {offsets = [0, 0], sizes = [16, 48], strides = [1, 1]} : vector<32x48xf32> to vector<16x48xf32>
    %cst_12 = arith.constant dense<0xFF800000> : vector<48xf32>
    %32 = vector.multi_reduction <maximumf>, %31, %cst_12 [0] : vector<16x48xf32> to vector<48xf32>
    %33 = vector.shape_cast %32 : vector<48xf32> to vector<1x48xf32>
    %34 = vector.extract_strided_slice %30 {offsets = [16, 0], sizes = [16, 48], strides = [1, 1]} : vector<32x48xf32> to vector<16x48xf32>
    %cst_13 = arith.constant dense<0xFF800000> : vector<48xf32>
    %35 = vector.multi_reduction <maximumf>, %34, %cst_13 [0] : vector<16x48xf32> to vector<48xf32>
    %36 = vector.shape_cast %35 : vector<48xf32> to vector<1x48xf32>
    %37 = tpu.concatenate %33, %36 in 0 : vector<1x48xf32>, vector<1x48xf32> -> vector<2x48xf32>
    %c128 = arith.constant 128 : index
    %c0_14 = arith.constant 0 : index
    %38 = vector.load %arg2[%c128, %c0_14] : memref<192x48xbf16, #tpu.memory_space<vmem>>, vector<48x48xbf16>
    %39 = arith.truncf %37 : vector<2x48xf32> to vector<2x48xbf16>
    %cst_15 = arith.constant dense<0.000000e+00> : vector<2x48xf32>
    %40 = tpu.matmul %39, %38, %cst_15 {dimension_numbers = #tpu.dot_dimension_numbers<[1], [0], [0], [1], [0, 0, 1, 1], [], []>} : vector<2x48xbf16>, vector<48x48xbf16>, vector<2x48xf32> -> vector<2x48xf32>
    %c184 = arith.constant 184 : index
    %c0_16 = arith.constant 0 : index
    %41 = vector.load %arg2[%c184, %c0_16] : memref<192x48xbf16, #tpu.memory_space<vmem>>, vector<1x48xbf16>
    %42 = arith.extf %41 : vector<1x48xbf16> to vector<1x48xf32>
    %43 = vector.broadcast %42 : vector<1x48xf32> to vector<2x48xf32>
    %44 = arith.addf %40, %43 : vector<2x48xf32>
    %45 = vector.extract_strided_slice %44 {offsets = [0, 0], sizes = [2, 8], strides = [1, 1]} : vector<2x48xf32> to vector<2x8xf32>
    %c0_17 = arith.constant 0 : index
    %c0_18 = arith.constant 0 : index
    %46 = vector.load %arg3[%c0_17, %c0_18] : memref<2x8xf32, #tpu.memory_space<vmem>>, vector<2x8xf32>
    tpu.vector_store %arg3[%c0_17, %c0_18], %45 {strides = array<i32>} : memref<2x8xf32, #tpu.memory_space<vmem>>, vector<2x8xf32>,
    return
  }
}

</mosaic_0001>

<llo_original>
// kernel: tpu_custom_call.1
$region0: #{tpu_custom_call.1}
  #allocation0 [shape = 'u32[]', space=smem, size = 0x4, offset = 0x4, fixed_abs, tag = 'smem constant byte address 0x4 - core index']
  #allocation1 [shape = 'u32[144,128]{1,0:T(1,128)}', space=vmem, size = 0x12000, scoped, tag = 'internal scratch']
  %s0 = inlined_call_operand.vmem [shape: s32[32,1], index: 0, kind: input, shape index: {}]
  %s1 = inlined_call_operand.vmem [shape: bf16[32,32], index: 1, kind: input, shape index: {}]
  %s2 = inlined_call_operand.vmem [shape: bf16[192,48], index: 2, kind: input, shape index: {}]
  %s3 = inlined_call_operand.hbm [shape: f32[2,8], index: 3, kind: output, shape index: {}]
  %s4 = sld [smem:[#allocation0]]
  $region22: #{tpu_custom_call.1} parent=0
    _
  %s6 = ssub.s32 1, %s4
  %s7 = scalar_select 0, %s6, %s4
  $region1: #{tpu_custom_call.1} parent=0
    #allocation2 [shape = 'u8[1024]{0}', space=vmem, size = 0x400, scoped, tag = 'output window, operand 0, single buffered']
    #allocation3 [shape = 's32[1]{0}', space=sflag, size = 0x4, scoped, tag = 'scoped memory for tpu_custom_call.1']
    %8 = vsyncpa [#allocation3], 0
    // Predicated region
    $region2: #{tpu_custom_call.1} parent=1 // pred_check
      _
    $region3: #{tpu_custom_call.1} parent=1 // pred_check_branch
      %10 = sbr.rel (0) target = $region5
    $region4: #{tpu_custom_call.1} parent=1 // pred_region
      _
    $region5: #{tpu_custom_call.1} parent=1 // pred_fallthru
      _
    // Predicated region
    $region6: #{tpu_custom_call.1} parent=1 // pred_check
      _
    $region7: #{tpu_custom_call.1} parent=1 // pred_check_branch
      %12 = sbr.rel (0) target = $region9
    $region8: #{tpu_custom_call.1} parent=1 // pred_region
      _
    $region9: #{tpu_custom_call.1} parent=1 // pred_fallthru
      _
    // Predicated region
    $region10: #{tpu_custom_call.1} parent=1 // pred_check
      _
    $region11: #{tpu_custom_call.1} parent=1 // pred_check_branch
      %14 = sbr.rel (0) target = $region13
    $region12: #{tpu_custom_call.1} parent=1 // pred_region
      _
    $region13: #{tpu_custom_call.1} parent=1 // pred_fallthru
      _
    %v16 = vld [vmem:[%s0] sm:$0xff]
    %v17 = vld [vmem:[%s0 + $0x8] sm:$0xff]
    %v18 = vld [vmem:[%s0 + $0x10] sm:$0xff]
    %v19 = vld [vmem:[%s0 + $0x18] sm:$0xff]
    %v20 = vlaneseq
    %v21 = vand.u32 %v20, 127
    %22 = vset.pattern.permute.xlu0 0
    %23 = vperm.xlu0 %22, %v16
    %v24 = vpop.permute.xlu0 %23
    %25 = vset.pattern.permute.xlu0 0
    %26 = vperm.xlu0 %25, %v17
    %v27 = vpop.permute.xlu0 %26
    %28 = vset.pattern.permute.xlu0 0
    %29 = vperm.xlu0 %28, %v18
    %v30 = vpop.permute.xlu0 %29
    %31 = vset.pattern.permute.xlu0 0
    %32 = vperm.xlu0 %31, %v19
    %v33 = vpop.permute.xlu0 %32
    %vm34 = vcmp.eq.s32.totalorder %v24, %v21
    %vm35 = vcmp.eq.s32.totalorder %v27, %v21
    %vm36 = vcmp.eq.s32.totalorder %v30, %v21
    %vm37 = vcmp.eq.s32.totalorder %v33, %v21
    %v38 = vsel %vm34, 1, 0
    %v39 = vsel %vm35, 1, 0
    %v40 = vsel %vm36, 1, 0
    %v41 = vsel %vm37, 1, 0
    %v42 = vcvt.s32.f32 %v38
    %v43 = vcvt.s32.f32 %v39
    %v44 = vcvt.s32.f32 %v40
    %v45 = vcvt.s32.f32 %v41
    %v46 = vpack.c.bf16 %v43, %v42
    %v47 = vpack.c.bf16 %v45, %v44
    %v48 = vld [vmem:[%s1] sm:$0xf]
    %v49 = vld [vmem:[%s1 + $0x4] sm:$0xf]
    %v50 = vld [vmem:[%s1 + $0x8] sm:$0xf]
    %v51 = vld [vmem:[%s1 + $0xc] sm:$0xf]
    %v56 = vunpack.c.l.b16 %v48
    %v57 = vunpack.c.l.b16 %v49
    %v58 = vunpack.c.l.b16 %v50
    %v59 = vunpack.c.l.b16 %v51
    %v60 = vpack.c.b16 %v57, %v56
    %v61 = vpack.c.b16 %v59, %v58
    %vm64 = vcmask 261120
    %v66 = vsel %vm64, %v46, 0
    %v69 = vsel %vm64, %v47, 0
    %71 = vmatprep.subr.bf16.mxu0 0
    %72 = vmatpush1.bf16.msra.mxu0 %v60
    %73 = vmatprep.subr.bf16.mxu0 0
    %74 = vmatpush1.bf16.msra.mxu0 %v61
    %75 = vmatprep.subr.bf16.mxu0 0
    %76 = vmatpush1.bf16.msra.mxu0 0
    %77 = vmatprep.subr.bf16.mxu0 0
    %78 = vmatpush1.bf16.msra.mxu0 0
    %79 = vmatprep.subr.bf16.mxu0 0
    %80 = vmatpush1.bf16.msra.mxu0 0
    %81 = vmatprep.subr.bf16.mxu0 0
    %82 = vmatpush1.bf16.msra.mxu0 0
    %83 = vmatprep.subr.bf16.mxu0 0
    %84 = vmatpush1.bf16.msra.mxu0 0
    %85 = vmatprep.subr.bf16.mxu0 0
    %86 = vmatpush1.bf16.msra.mxu0 0
    %87 = vmatprep.subr.bf16.mxu0 0
    %88 = vmatpush1.bf16.msra.mxu0 0
    %89 = vmatprep.subr.bf16.mxu0 0
    %90 = vmatpush1.bf16.msra.mxu0 0
    %91 = vmatprep.subr.bf16.mxu0 0
    %92 = vmatpush1.bf16.msra.mxu0 0
    %93 = vmatprep.subr.bf16.mxu0 0
    %94 = vmatpush1.bf16.msra.mxu0 0
    %95 = vmatprep.subr.bf16.mxu0 0
    %96 = vmatpush1.bf16.msra.mxu0 0
    %97 = vmatprep.subr.bf16.mxu0 0
    %98 = vmatpush1.bf16.msra.mxu0 0
    %99 = vmatprep.subr.bf16.mxu0 0
    %100 = vmatpush1.bf16.msra.mxu0 0
    %101 = vmatprep.subr.bf16.mxu0 0
    %102 = vmatpush1.bf16.msra.mxu0 0
    %103 = vmatprep.mubr.bf16.mxu0 0
    %104 = vmatmul.mubr.bf16.gmra.mrb[0].mxu0 %v66
    %v105 = vpop.f32.mrb[0].mxu0
    %v106 = vadd.f32 0.0, %v105
    %v107 = vpop.f32.mrb[0].mxu0
    %v108 = vpop.f32.mrb[0].mxu0
    %v109 = vadd.f32 0.0, %v108
    %v110 = vpop.f32.mrb[0].mxu0
    %111 = vmatprep.mubr.bf16.mxu0 0
    %112 = vmatmul.mubr.bf16.gmra.mrb[0].mxu0 %v69
    %v113 = vpop.f32.mrb[0].mxu0
    %v114 = vadd.f32 0.0, %v113
    %v115 = vpop.f32.mrb[0].mxu0
    %v116 = vpop.f32.mrb[0].mxu0
    %v117 = vadd.f32 0.0, %v116
    %v118 = vpop.f32.mrb[0].mxu0
    %119 = vdwg.mxu0
    %v120 = vrot.slane %v106, 1
    %v121 = vrot.slane %v109, 1
    %v122 = vrot.slane %v114, 1
    %v123 = vrot.slane %v117, 1
    %v124 = vlaneseq
    %v125 = vshrl.u32 %v124, 7
    %vm126 = vcmp.lt.s32.totalorder %v125, 7
    %v127 = vsel %vm126, %v122, %v123
    %v128 = vsel %vm126, %v121, %v122
    %v129 = vsel %vm126, %v120, %v121
    %v130 = vsel %vm126, %v123, %v120
    %v131 = vrot.slane %v106, 2
    %v132 = vrot.slane %v109, 2
    %v133 = vrot.slane %v114, 2
    %v134 = vrot.slane %v117, 2
    %vm135 = vcmp.lt.s32.totalorder %v125, 6
    %v136 = vsel %vm135, %v133, %v134
    %v137 = vsel %vm135, %v132, %v133
    %v138 = vsel %vm135, %v131, %v132
    %v139 = vsel %vm135, %v134, %v131
    %144 = vrot.lane.b32.xlu0 %v129, 32
    %v145 = vpop.permute.xlu0 %144
    %146 = vrot.lane.b32.xlu0 %v128, 32
    %v147 = vpop.permute.xlu0 %146
    %148 = vrot.lane.b32.xlu0 %v127, 32
    %v149 = vpop.permute.xlu0 %148
    %150 = vrot.lane.b32.xlu0 %v130, 32
    %v151 = vpop.permute.xlu0 %150
    %160 = vrot.lane.b32.xlu0 %v138, 64
    %v161 = vpop.permute.xlu0 %160
    %162 = vrot.lane.b32.xlu0 %v137, 64
    %v163 = vpop.permute.xlu0 %162
    %164 = vrot.lane.b32.xlu0 %v136, 64
    %v165 = vpop.permute.xlu0 %164
    %166 = vrot.lane.b32.xlu0 %v139, 64
    %v167 = vpop.permute.xlu0 %166
    %v172 = vsel %vm64, %v106, %v145
    %v173 = vsel %vm64, %v109, %v147
    %v174 = vsel %vm64, %v114, %v149
    %v175 = vsel %vm64, %v117, %v151
    %vm176 = vcmask 523264
    %v177 = vsel %vm176, %v172, %v161
    %v178 = vsel %vm176, %v173, %v163
    %v179 = vsel %vm176, %v174, %v165
    %v180 = vsel %vm176, %v175, %v167
    %v181 = vpack.c.bf16 %v178, %v177
    %v182 = vpack.c.bf16 %v180, %v179
    %v183 = vld [vmem:[%s2] sm:$0xf]
    %v184 = vld [vmem:[%s2 + $0x4] sm:$0xf]
    %v185 = vld [vmem:[%s2 + $0x8] sm:$0xf]
    %v186 = vld [vmem:[%s2 + $0xc] sm:$0xf]
    %v187 = vld [vmem:[%s2 + $0x10] sm:$0xf]
    %v188 = vld [vmem:[%s2 + $0x14] sm:$0xf]
    %v189 = vld [vmem:[%s2 + $0x18] sm:$0xf]
    %v190 = vld [vmem:[%s2 + $0x1c] sm:$0xf]
    %v191 = vld [vmem:[%s2 + $0x20] sm:$0xf]
    %v192 = vld [vmem:[%s2 + $0x24] sm:$0xf]
    %v193 = vld [vmem:[%s2 + $0x28] sm:$0xf]
    %v194 = vld [vmem:[%s2 + $0x2c] sm:$0xf]
    %v195 = vld [vmem:[%s2 + $0x58] sm:$0x1]
    %v196 = vunpack.c.l.bf16 %v195
    %v197 = vlaneseq
    %v198 = vshrl.u32 %v197, 7
    %v199 = vsub.s32 0, %v198
    %v200 = vrot.slane %v196, %v199
    %v213 = vunpack.c.l.b16 %v183
    %v214 = vunpack.c.l.b16 %v184
    %v215 = vunpack.c.l.b16 %v185
    %v216 = vunpack.c.l.b16 %v186
    %v217 = vunpack.c.l.b16 %v187
    %v218 = vunpack.c.l.b16 %v188
    %v219 = vunpack.c.l.b16 %v189
    %v220 = vunpack.c.l.b16 %v190
    %v221 = vunpack.c.l.b16 %v191
    %v222 = vunpack.c.l.b16 %v192
    %v223 = vunpack.c.l.b16 %v193
    %v224 = vunpack.c.l.b16 %v194
    %v225 = vpack.c.b16 %v214, %v213
    %v226 = vpack.c.b16 %v216, %v215
    %v227 = vpack.c.b16 %v218, %v217
    %v228 = vpack.c.b16 %v220, %v219
    %v229 = vpack.c.b16 %v222, %v221
    %v230 = vpack.c.b16 %v224, %v223
    %vm237 = vcmask 785408
    %v239 = vsel %vm237, %v181, 0
    %v242 = vsel %vm237, %v182, 0
    %244 = vmatprep.subr.bf16.mxu0 0
    %245 = vmatpush1.bf16.msra.mxu0 %v225
    %246 = vmatprep.subr.bf16.mxu0 0
    %247 = vmatpush1.bf16.msra.mxu0 %v226
    %248 = vmatprep.subr.bf16.mxu0 0
    %249 = vmatpush1.bf16.msra.mxu0 %v227
    %250 = vmatprep.subr.bf16.mxu0 0
    %251 = vmatpush1.bf16.msra.mxu0 %v228
    %252 = vmatprep.subr.bf16.mxu0 0
    %253 = vmatpush1.bf16.msra.mxu0 %v229
    %254 = vmatprep.subr.bf16.mxu0 0
    %255 = vmatpush1.bf16.msra.mxu0 %v230
    %256 = vmatprep.subr.bf16.mxu0 0
    %257 = vmatpush1.bf16.msra.mxu0 0
    %258 = vmatprep.subr.bf16.mxu0 0
    %259 = vmatpush1.bf16.msra.mxu0 0
    %260 = vmatprep.subr.bf16.mxu0 0
    %261 = vmatpush1.bf16.msra.mxu0 0
    %262 = vmatprep.subr.bf16.mxu0 0
    %263 = vmatpush1.bf16.msra.mxu0 0
    %264 = vmatprep.subr.bf16.mxu0 0
    %265 = vmatpush1.bf16.msra.mxu0 0
    %266 = vmatprep.subr.bf16.mxu0 0
    %267 = vmatpush1.bf16.msra.mxu0 0
    %268 = vmatprep.subr.bf16.mxu0 0
    %269 = vmatpush1.bf16.msra.mxu0 0
    %270 = vmatprep.subr.bf16.mxu0 0
    %271 = vmatpush1.bf16.msra.mxu0 0
    %272 = vmatprep.subr.bf16.mxu0 0
    %273 = vmatpush1.bf16.msra.mxu0 0
    %274 = vmatprep.subr.bf16.mxu0 0
    %275 = vmatpush1.bf16.msra.mxu0 0
    %276 = vmatprep.mubr.bf16.mxu0 0
    %277 = vmatmul.mubr.bf16.gmra.mrb[0].mxu0 %v239
    %v278 = vpop.f32.mrb[0].mxu0
    %v279 = vadd.f32 %v200, %v278
    %v280 = vpop.f32.mrb[0].mxu0
    %v281 = vpop.f32.mrb[0].mxu0
    %v282 = vadd.f32 %v200, %v281
    %v283 = vpop.f32.mrb[0].mxu0
    %284 = vmatprep.mubr.bf16.mxu0 0
    %285 = vmatmul.mubr.bf16.gmra.mrb[0].mxu0 %v242
    %v286 = vpop.f32.mrb[0].mxu0
    %v287 = vadd.f32 %v200, %v286
    %v288 = vpop.f32.mrb[0].mxu0
    %v289 = vpop.f32.mrb[0].mxu0
    %v290 = vadd.f32 %v200, %v289
    %v291 = vpop.f32.mrb[0].mxu0
    %292 = vdwg.mxu0
    %v293 = vadd.f32 %v279, 3.0
    %v294 = vadd.f32 %v282, 3.0
    %v295 = vadd.f32 %v287, 3.0
    %v296 = vadd.f32 %v290, 3.0
    %v297 = vmax.f32 %v293, 0.0
    %v298 = vmax.f32 %v294, 0.0
    %v299 = vmax.f32 %v295, 0.0
    %v300 = vmax.f32 %v296, 0.0
    %v301 = vmin.f32 %v297, 6.0
    %v302 = vmin.f32 %v298, 6.0
    %v303 = vmin.f32 %v299, 6.0
    %v304 = vmin.f32 %v300, 6.0
    %v305 = vmul.f32 %v279, %v301
    %v306 = vmul.f32 %v282, %v302
    %v307 = vmul.f32 %v287, %v303
    %v308 = vmul.f32 %v290, %v304
    %v309 = vmul.f32 %v305, 0.16666667
    %v310 = vmul.f32 %v306, 0.16666667
    %v311 = vmul.f32 %v307, 0.16666667
    %v312 = vmul.f32 %v308, 0.16666667
    %v313 = vld [vmem:[%s2 + $0x30] sm:$0xf]
    %v314 = vld [vmem:[%s2 + $0x34] sm:$0xf]
    %v315 = vld [vmem:[%s2 + $0x38] sm:$0xf]
    %v316 = vld [vmem:[%s2 + $0x3c] sm:$0xf]
    %v317 = vunpack.c.l.bf16 %v313
    %v318 = vunpack.c.l.bf16 %v314
    %v319 = vunpack.c.l.bf16 %v315
    %v320 = vunpack.c.l.bf16 %v316
    %v321 = vadd.f32 %v309, %v317
    %v322 = vadd.f32 %v310, %v318
    %v323 = vadd.f32 %v311, %v319
    %v324 = vadd.f32 %v312, %v320
    %vm325 = vcmask 392192
    %v326 = vsel %vm325, %v321, -inf
    %v327 = vsel %vm325, %v322, -inf
    %v328 = vmax.f32 %v326, %v327
    %v329 = vrot.slane %v328, 4
    %v330 = vmax.f32 %v328, %v329
    %v331 = vrot.slane %v330, 2
    %v332 = vmax.f32 %v330, %v331
    %v333 = vrot.slane %v332, 1
    %v334 = vmax.f32 %v332, %v333
    %v335 = vsel %vm325, %v323, -inf
    %v336 = vsel %vm325, %v324, -inf
    %v337 = vmax.f32 %v335, %v336
    %v338 = vrot.slane %v337, 4
    %v339 = vmax.f32 %v337, %v338
    %v340 = vrot.slane %v339, 2
    %v341 = vmax.f32 %v339, %v340
    %v342 = vrot.slane %v341, 1
    %v343 = vmax.f32 %v341, %v342
    %vm344 = vcmask 1040384
    %v345 = vsel %vm344, %v334, %v343
    %v346 = vld [vmem:[%s2 + $0x40] sm:$0xf]
    %v347 = vld [vmem:[%s2 + $0x44] sm:$0xf]
    %v348 = vld [vmem:[%s2 + $0x48] sm:$0xf]
    %v349 = vld [vmem:[%s2 + $0x4c] sm:$0xf]
    %v350 = vld [vmem:[%s2 + $0x50] sm:$0xf]
    %v351 = vld [vmem:[%s2 + $0x54] sm:$0xf]
    %v352 = vpack.c.bf16 %v345, %v345
    %v353 = vld [vmem:[%s2 + $0x5c] sm:$0x1]
    %v354 = vunpack.c.l.bf16 %v353
    %v355 = vlaneseq
    %v356 = vshrl.u32 %v355, 7
    %v357 = vsub.s32 0, %v356
    %v358 = vrot.slane %v354, %v357
    %v365 = vunpack.c.l.b16 %v346
    %v366 = vunpack.c.l.b16 %v347
    %v367 = vunpack.c.l.b16 %v348
    %v368 = vunpack.c.l.b16 %v349
    %v369 = vunpack.c.l.b16 %v350
    %v370 = vunpack.c.l.b16 %v351
    %v371 = vpack.c.b16 %v366, %v365
    %v372 = vpack.c.b16 %v368, %v367
    %v373 = vpack.c.b16 %v370, %v369
    %v378 = vsel %vm325, %v352, 0
    %380 = vmatprep.subr.bf16.mxu0 0
    %381 = vmatpush1.bf16.msra.mxu0 %v371
    %382 = vmatprep.subr.bf16.mxu0 0
    %383 = vmatpush1.bf16.msra.mxu0 %v372
    %384 = vmatprep.subr.bf16.mxu0 0
    %385 = vmatpush1.bf16.msra.mxu0 %v373
    %386 = vmatprep.subr.bf16.mxu0 0
    %387 = vmatpush1.bf16.msra.mxu0 0
    %388 = vmatprep.subr.bf16.mxu0 0
    %389 = vmatpush1.bf16.msra.mxu0 0
    %390 = vmatprep.subr.bf16.mxu0 0
    %391 = vmatpush1.bf16.msra.mxu0 0
    %392 = vmatprep.subr.bf16.mxu0 0
    %393 = vmatpush1.bf16.msra.mxu0 0
    %394 = vmatprep.subr.bf16.mxu0 0
    %395 = vmatpush1.bf16.msra.mxu0 0
    %396 = vmatprep.subr.bf16.mxu0 0
    %397 = vmatpush1.bf16.msra.mxu0 0
    %398 = vmatprep.subr.bf16.mxu0 0
    %399 = vmatpush1.bf16.msra.mxu0 0
    %400 = vmatprep.subr.bf16.mxu0 0
    %401 = vmatpush1.bf16.msra.mxu0 0
    %402 = vmatprep.subr.bf16.mxu0 0
    %403 = vmatpush1.bf16.msra.mxu0 0
    %404 = vmatprep.subr.bf16.mxu0 0
    %405 = vmatpush1.bf16.msra.mxu0 0
    %406 = vmatprep.subr.bf16.mxu0 0
    %407 = vmatpush1.bf16.msra.mxu0 0
    %408 = vmatprep.subr.bf16.mxu0 0
    %409 = vmatpush1.bf16.msra.mxu0 0
    %410 = vmatprep.subr.bf16.mxu0 0
    %411 = vmatpush1.bf16.msra.mxu0 0
    %412 = vmatprep.mubr.bf16.mxu0 0
    %413 = vmatmul.mubr.bf16.gmra.mrb[0].mxu0 %v378
    %v414 = vpop.f32.mrb[0].mxu0
    %v415 = vadd.f32 %v358, %v414
    %v416 = vpop.f32.mrb[0].mxu0
    %v417 = vpop.f32.mrb[0].mxu0
    %v418 = vpop.f32.mrb[0].mxu0
    %419 = vdwg.mxu0
    %vm420 = vcmask 58368
    %421 = vst.msk [vmem:[#allocation2] sm:$0x3] %vm420, %v415
    // Predicated region
    $region14: #{tpu_custom_call.1} parent=1 // pred_check
      _
    $region15: #{tpu_custom_call.1} parent=1 // pred_check_branch
      %423 = sbr.rel (0) target = $region17
    $region16: #{tpu_custom_call.1} parent=1 // pred_region
      %s425 = ssub.s32 32, 32
      %426 = vsyncadd [#allocation3], %s425
      %s428 = sshll.u32 [#allocation2], 4
      %s429 = int_to_ptr.vmem [resolvable:$true] %s428
      %431 = dma.vmem_to_hbm [thread:$0]  %s429, 32, %s3, [#allocation3]
    $region17: #{tpu_custom_call.1} parent=1 // pred_fallthru
      _
    // Predicated region
    $region18: #{tpu_custom_call.1} parent=1 // pred_check
      _
    $region19: #{tpu_custom_call.1} parent=1 // pred_check_branch
      %433 = sbr.rel (0) target = $region21
    $region20: #{tpu_custom_call.1} parent=1 // pred_region
      %434 = dma.done [#allocation3], 32
    $region21: #{tpu_custom_call.1} parent=1 // pred_fallthru
      _
    %435 = vsyncpa [#allocation3], 1

</llo_original>
